<compile_context>
chip_gen: v7x
topology: tpu7x:2x2x1
jax: 0.10.0
libtpu: 0.0.40
codegen_flags: <defaults>
</compile_context>

<pallas_src>
import functools
import numpy as np

import jax
import jax.numpy as jnp
from jax.experimental import pallas as pl
from jax.experimental.pallas import tpu as pltpu


# ----------------------------------------------------------------------------
# Pallas kernels
# ----------------------------------------------------------------------------

def _linear_kernel(x_ref, w_ref, b_ref, o_ref, *, apply_relu):
    """Fused (x @ w + b) [+ ReLU]; bf16 operands, f32 accumulation."""
    acc = jnp.dot(x_ref[...], w_ref[...], preferred_element_type=jnp.float32)
    acc = acc + b_ref[...]
    if apply_relu:
        acc = jnp.maximum(acc, 0.0)
    o_ref[...] = acc.astype(o_ref.dtype)


# Below this footprint everything (x, w, b, out) fits comfortably in a single
# VMEM-resident block even on v5e's 16 MiB default scoped VMEM, so we skip the
# grid entirely (grid-step overhead >> MXU time at these sizes).
_GRIDLESS_VMEM_BYTES = 4 * 1024 * 1024


def pallas_linear(x, w, b, relu=False):
    """y = x @ w + b (+ReLU).  x:(M,K) w:(K,N) b:(N,) -> (M,N) f32."""
    M, K = x.shape
    K2, N = w.shape
    assert K == K2
    xb = x.astype(jnp.bfloat16)
    wb = w.astype(jnp.bfloat16)
    b2 = b.reshape(1, N).astype(jnp.float32)
    kern = functools.partial(_linear_kernel, apply_relu=relu)

    footprint = 2 * (M * K + K * N) + 4 * (M * N + N)
    if footprint <= _GRIDLESS_VMEM_BYTES:
        # Single launch, whole operands resident in VMEM.
        return pl.pallas_call(
            kern,
            out_shape=jax.ShapeDtypeStruct((M, N), jnp.float32),
        )(xb, wb, b2)

    # Tiled fallback for large problems (not hit in this workload).
    bm = M if M <= 512 else 512
    bn = N if N <= 512 else 512
    assert M % bm == 0 and N % bn == 0, (M, N, bm, bn)
    return pl.pallas_call(
        kern,
        out_shape=jax.ShapeDtypeStruct((M, N), jnp.float32),
        grid=(M // bm, N // bn),
        in_specs=[
            pl.BlockSpec((bm, K), lambda i, j: (i, 0)),
            pl.BlockSpec((K, bn), lambda i, j: (0, j)),
            pl.BlockSpec((1, bn), lambda i, j: (0, j)),
        ],
        out_specs=pl.BlockSpec((bm, bn), lambda i, j: (i, j)),
        compiler_params=pltpu.CompilerParams(
            dimension_semantics=("parallel", "parallel"),
            vmem_limit_bytes=32 * 1024 * 1024),
    )(xb, wb, b2)


def _pose_mlp_kernel(x_ref, w1_ref, b1_ref, w2_ref, b2_ref, w3_ref, b3_ref, o_ref):
    """3-layer MLP (Linear+ReLU, Linear+ReLU, Linear) fully fused in VMEM."""
    h = jnp.dot(x_ref[...], w1_ref[...], preferred_element_type=jnp.float32)
    h = jnp.maximum(h + b1_ref[...], 0.0).astype(jnp.bfloat16)
    h = jnp.dot(h, w2_ref[...], preferred_element_type=jnp.float32)
    h = jnp.maximum(h + b2_ref[...], 0.0).astype(jnp.bfloat16)
    o = jnp.dot(h, w3_ref[...], preferred_element_type=jnp.float32) + b3_ref[...]
    o_ref[...] = o.astype(o_ref.dtype)


def pallas_pose_mlp(x, w1, b1, w2, b2, w3, b3):
    """MLPFromLatent forward (dropout = identity in eval): one Pallas launch."""
    B = x.shape[0]
    dout = w3.shape[1]
    args = (
        x.astype(jnp.bfloat16),
        w1.astype(jnp.bfloat16), b1.reshape(1, -1).astype(jnp.float32),
        w2.astype(jnp.bfloat16), b2.reshape(1, -1).astype(jnp.float32),
        w3.astype(jnp.bfloat16), b3.reshape(1, -1).astype(jnp.float32),
    )
    return pl.pallas_call(
        _pose_mlp_kernel,
        out_shape=jax.ShapeDtypeStruct((B, dout), jnp.float32),
        # bf16 weights total ~8.5 MiB; raise the scoped-VMEM limit explicitly so
        # the same config is safe on v5e's 16 MiB default scope as well.
        compiler_params=pltpu.CompilerParams(vmem_limit_bytes=32 * 1024 * 1024),
    )(*args)


def _geo_kernel(w2c_ref, c2w_ref, w2cT_ref, c2wT_ref, lat_ref, c2c_ref, rot_ref):
    """cam2cam = w2c_shuffled @ c2w and latent_3d_rotated = latent_3d @ cam2cam^T.

    The contraction length is 3, so this is done on the VPU with broadcast
    multiplies (no per-batch grid, no MXU). The transpose of cam2cam is avoided
    by computing cam2cam^T = c2w^T @ w2c_shuffled^T from pre-transposed inputs.
    """
    def bmm3(a, b):  # a:(B,P,3)  b:(B,3,3)  -> (B,P,3)
        return (a[:, :, 0:1] * b[:, 0:1, :] +
                a[:, :, 1:2] * b[:, 1:2, :] +
                a[:, :, 2:3] * b[:, 2:3, :])

    c2c = bmm3(w2c_ref[...], c2w_ref[...])
    c2c_ref[...] = c2c.astype(c2c_ref.dtype)
    c2cT = bmm3(c2wT_ref[...], w2cT_ref[...])
    rot_ref[...] = bmm3(lat_ref[...], c2cT).astype(rot_ref.dtype)


def pallas_geometry(w2c_shuffled, c2w, latent_3d):
    B, P, _ = latent_3d.shape
    w2cT = jnp.swapaxes(w2c_shuffled, 1, 2)
    c2wT = jnp.swapaxes(c2w, 1, 2)
    return pl.pallas_call(
        _geo_kernel,
        out_shape=(jax.ShapeDtypeStruct((B, 3, 3), jnp.float32),
                   jax.ShapeDtypeStruct((B, P, 3), jnp.float32)),
    )(w2c_shuffled.astype(jnp.float32), c2w.astype(jnp.float32),
      w2cT.astype(jnp.float32), c2wT.astype(jnp.float32),
      latent_3d.astype(jnp.float32))


def conv3x3(x_nhwc, w, b, relu=False):
    """3x3 stride-1 pad-1 conv: im2col in JAX glue, single grid-less Pallas GEMM.
    x:(B,H,W,Cin)  w:(3,3,Cin,Cout)  b:(Cout,)  -> (B,H,W,Cout)."""
    B, H, W, C = x_nhwc.shape
    xp = jnp.pad(x_nhwc, ((0, 0), (1, 1), (1, 1), (0, 0)))
    cols = [xp[:, dh:dh + H, dw:dw + W, :] for dh in range(3) for dw in range(3)]
    patches = jnp.concatenate(cols, axis=-1).reshape(B * H * W, 9 * C)
    wmat = w.reshape(9 * C, w.shape[-1])
    out = pallas_linear(patches, wmat, b, relu=relu)
    return out.reshape(B, H, W, -1)


# ----------------------------------------------------------------------------
# Parameter init (deterministic, synthetic weights)
# ----------------------------------------------------------------------------

def init_params(key, cfg):
    f = cfg["filters"]
    L = cfg["num_encoding_layers"]
    br = cfg["bottleneck_resolution"]
    nof = br * br * f[L - 1]                      # num_output_features
    nof3d = br * br * (f[L - 1] - cfg["dimension_fg"])

    keys = iter(jax.random.split(key, 32))

    def lin(din, dout):
        w = jax.random.normal(next(keys), (din, dout), jnp.float32) / np.sqrt(din)
        return w, jnp.zeros((dout,), jnp.float32)

    def conv(kh, kw, cin, cout):
        w = jax.random.normal(next(keys), (kh, kw, cin, cout), jnp.float32) / np.sqrt(kh * kw * cin)
        return w, jnp.zeros((cout,), jnp.float32)

    p = {}
    # encoder stand-in: 1x1 projection at bottleneck, then to_3d / to_fg heads
    p["enc_w"], p["enc_b"] = lin(cfg["in_channels"], f[L - 1])
    p["to_3d_w"], p["to_3d_b"] = lin(nof, cfg["dimension_3d"])
    p["to_fg_w"], p["to_fg_b"] = lin(nof, cfg["dimension_fg"])
    # conv_1_stage_bg0 (unetConv2: two conv3x3+ReLU; BN is identity in eval)
    p["bg_c1_w"], p["bg_c1_b"] = conv(3, 3, cfg["in_channels"], f[0])
    p["bg_c2_w"], p["bg_c2_b"] = conv(3, 3, f[0], f[0])
    # from_latent
    p["fl_w"], p["fl_b"] = lin(cfg["dimension_3d"], nof3d)
    # decoder stand-in
    p["dec1_w"], p["dec1_b"] = lin(f[L - 1], f[0])
    p["dec_out_w"], p["dec_out_b"] = conv(3, 3, f[0], cfg["out_channels"])
    # to_pose MLP (d_hidden=2048, n_hidden=2)
    d3 = cfg["dimension_3d"]
    dh = 2048
    dout = cfg["num_joints"] * cfg["num_dims"]
    p["pose_w1"], p["pose_b1"] = lin(d3, dh)
    p["pose_w2"], p["pose_b2"] = lin(dh, dh)
    p["pose_w3"], p["pose_b3"] = lin(dh, dout)
    return p


# ----------------------------------------------------------------------------
# Forward pass (eval mode)
# ----------------------------------------------------------------------------

def geo_aware_forward(params, input_dict, cfg):
    img = input_dict["img_crop"]            # (B, C, R, R) NCHW
    bg = input_dict["bg_crop"]              # (B, C, R, R) NCHW
    B = img.shape[0]
    R = cfg["in_resolution"]
    f = cfg["filters"]
    L = cfg["num_encoding_layers"]
    br = cfg["bottleneck_resolution"]
    d3 = cfg["dimension_3d"]
    dfg = cfg["dimension_fg"]
    sb = cfg["subbatch_size"]

    # ----- shuffle bookkeeping (eval: appearance identity, pose = roll-by-1) -----
    shuffled_appearance = list(range(B))
    shuffled_pose = list(range(B))
    num_sub = B // max(sb, 1)
    for i in range(num_sub):
        seg = shuffled_pose[i * sb:(i + 1) * sb]
        shuffled_pose[i * sb:(i + 1) * sb] = list(np.roll(seg, 1))
    shuffled_pose_inv = [-1] * B
    for i, v in enumerate(shuffled_pose):
        shuffled_pose_inv[v] = i
    app_idx = jnp.asarray(shuffled_appearance, jnp.int32)
    pose_idx = jnp.asarray(shuffled_pose, jnp.int32)
    pose_inv_idx = jnp.asarray(shuffled_pose_inv, jnp.int32)

    # ----- encoder (stand-in): pool to bottleneck, 1x1 conv, fused to_3d/to_fg -----
    # TODO(synk): encoder.Encoder internals not provided; stand-in keeps the
    # documented interface: latent_3d:(B, dimension_3d//3, 3), latent_fg:(B, dimension_fg).
    x = jnp.transpose(img, (0, 2, 3, 1)).astype(jnp.float32)          # NHWC
    stride = R // br
    xb = x.reshape(B, br, stride, br, stride, cfg["in_channels"]).mean(axis=(2, 4))
    enc_feat = pallas_linear(xb.reshape(B * br * br, cfg["in_channels"]),
                             params["enc_w"], params["enc_b"], relu=True)
    enc_flat = enc_feat.reshape(B, br * br * f[L - 1])                # (B, num_output_features)

    # to_3d (Linear, no ReLU) and to_fg (Linear + ReLU) fused into one GEMM;
    # ReLU applied to the fg slice afterwards (tiny elementwise op).
    heads_w = jnp.concatenate([params["to_3d_w"], params["to_fg_w"]], axis=1)
    heads_b = jnp.concatenate([params["to_3d_b"], params["to_fg_b"]], axis=0)
    heads_out = pallas_linear(enc_flat, heads_w, heads_b, relu=False)  # (B, d3+dfg)
    latent_3d = heads_out[:, :d3].reshape(B, d3 // 3, 3)
    latent_fg = jnp.maximum(heads_out[:, d3:], 0.0)

    # ----- cam2cam = bmm(world_2_cam[shuffled_pose], cam_2_world)
    #       latent_3d_rotated = bmm(latent_3d, cam2cam^T)   (single fused kernel) -----
    world_2_cam = input_dict["extrinsic_rot"].reshape(B, 3, 3).astype(jnp.float32)
    cam_2_world = input_dict["extrinsic_rot_inv"].reshape(B, 3, 3).astype(jnp.float32)
    world_2_cam_shuffled = jnp.take(world_2_cam, pose_idx, axis=0)
    cam2cam, latent_3d_rotated = pallas_geometry(world_2_cam_shuffled, cam_2_world, latent_3d)

    # ----- skip background: conv_1_stage_bg0 on shuffled background -----
    bg_nhwc = jnp.transpose(bg, (0, 2, 3, 1)).astype(jnp.float32)
    bg_shuf = jnp.take(bg_nhwc, pose_idx, axis=0)
    h = conv3x3(bg_shuf, params["bg_c1_w"], params["bg_c1_b"], relu=True)
    conv1_bg_shuffled = conv3x3(h, params["bg_c2_w"], params["bg_c2_b"], relu=True)   # (B,R,R,f0)

    # ----- appearance shuffle -----
    latent_fg_shuffled = jnp.take(latent_fg, app_idx, axis=0)

    # ----- from_latent: Linear + (Dropout=id) + ReLU -----
    map_from_3d = pallas_linear(latent_3d_rotated.reshape(B, d3),
                                params["fl_w"], params["fl_b"], relu=True)   # (B, nof3d)

    # ----- decoder (stand-in): bottleneck + fg broadcast, 1x1 conv, upsample,
    #       background skip, final 3x3 conv -----
    # TODO(synk): unet_decoder.UnetDecoder internals not provided; stand-in keeps
    # the documented interface (map_from_3d, latent_fg, conv1_bg -> image NCHW).
    cbott = f[L - 1] - dfg
    dec = map_from_3d.reshape(B, br, br, cbott)
    fg_map = jnp.broadcast_to(latent_fg_shuffled[:, None, None, :], (B, br, br, dfg))
    dec = jnp.concatenate([dec, fg_map], axis=-1)                     # (B,br,br,f[L-1])
    dec = pallas_linear(dec.reshape(B * br * br, f[L - 1]),
                        params["dec1_w"], params["dec1_b"], relu=True).reshape(B, br, br, f[0])
    up = R // br
    dec = jnp.repeat(jnp.repeat(dec, up, axis=1), up, axis=2)         # (B,R,R,f0)
    dec = dec + conv1_bg_shuffled
    out_img_shuf = conv3x3(dec, params["dec_out_w"], params["dec_out_b"], relu=False)
    output_img_shuffled = jnp.transpose(out_img_shuf, (0, 3, 1, 2))   # back to NCHW
    output_img = jnp.take(output_img_shuffled, pose_inv_idx, axis=0)

    # ----- to_pose MLP (MLPFromLatent, dropout=id in eval): one fused kernel -----
    output_pose = pallas_pose_mlp(latent_3d.reshape(B, d3),
                                  params["pose_w1"], params["pose_b1"],
                                  params["pose_w2"], params["pose_b2"],
                                  params["pose_w3"], params["pose_b3"])

    output_dict_all = {
        "3D": output_pose,
        "img_crop": output_img,
        "shuffled_pose": pose_idx,
        "shuffled_appearance": app_idx,
        "latent_3d": latent_3d,
        "cam2cam": cam2cam,
    }
    return {k: output_dict_all[k] for k in cfg["output_types"]}


# ----------------------------------------------------------------------------
# Main
# ----------------------------------------------------------------------------

if __name__ == "__main__":
    cfg = dict(
        feature_scale=4,
        in_resolution=16,
        out_channels=3,
        in_channels=3,
        num_encoding_layers=3,
        dimension_fg=32,
        dimension_3d=24,                      # divisible by 3
        num_joints=17,
        num_dims=3,
        subbatch_size=4,
        output_types=("3D", "img_crop", "shuffled_pose", "shuffled_appearance"),
    )
    cfg["filters"] = [int(x / cfg["feature_scale"]) for x in [64, 128, 256, 512, 512, 512]]
    cfg["bottleneck_resolution"] = cfg["in_resolution"] // 2 ** (cfg["num_encoding_layers"] - 1)
    assert cfg["dimension_fg"] < cfg["filters"][cfg["num_encoding_layers"] - 1]

    B, C, R = 8, cfg["in_channels"], cfg["in_resolution"]
    key = jax.random.PRNGKey(0)
    k_img, k_bg, k_ang, k_par = jax.random.split(key, 4)

    img_crop = jax.random.normal(k_img, (B, C, R, R), jnp.float32)
    bg_crop = jax.random.normal(k_bg, (B, C, R, R), jnp.float32)

    # deterministic per-sample rotations about the z-axis (world_2_cam), inverse = transpose
    angles = jax.random.uniform(k_ang, (B,), jnp.float32, 0.0, 2.0 * np.pi)
    c, s = jnp.cos(angles), jnp.sin(angles)
    z = jnp.zeros_like(c)
    o = jnp.ones_like(c)
    extrinsic_rot = jnp.stack(
        [c, -s, z,
         s, c, z,
         z, z, o], axis=-1).reshape(B, 3, 3)
    extrinsic_rot_inv = jnp.swapaxes(extrinsic_rot, 1, 2)

    input_dict = {
        "img_crop": img_crop,
        "bg_crop": bg_crop,
        "extrinsic_rot": extrinsic_rot,
        "extrinsic_rot_inv": extrinsic_rot_inv,
    }

    params = init_params(k_par, cfg)

    out = geo_aware_forward(params, input_dict, cfg)
    jax.block_until_ready(out)

    assert out["3D"].shape == (B, cfg["num_joints"] * cfg["num_dims"])
    assert out["img_crop"].shape == (B, cfg["out_channels"], R, R)
    assert out["shuffled_pose"].shape == (B,)
    assert out["shuffled_appearance"].shape == (B,)
    print("KERNEL_OK")
</pallas_src>

<mosaic_0001>
module attributes {stable_mosaic.version = 11 : i64} {
  func.func @_linear_kernel(%arg0: memref<128x3xbf16, #tpu.memory_space<vmem>>, %arg1: memref<3x64xbf16, #tpu.memory_space<vmem>>, %arg2: memref<1x64xf32, #tpu.memory_space<vmem>>, %arg3: memref<128x64xf32, #tpu.memory_space<vmem>>) attributes {dimension_semantics = [], scalar_prefetch = 0 : i64, scratch_operands = 0 : i64, tpu.core_type = #tpu.core_type<tc>} {
    %c0 = arith.constant 0 : index
    %c0_0 = arith.constant 0 : index
    %0 = vector.load %arg0[%c0, %c0_0] : memref<128x3xbf16, #tpu.memory_space<vmem>>, vector<128x3xbf16>
    %c0_1 = arith.constant 0 : index
    %c0_2 = arith.constant 0 : index
    %1 = vector.load %arg1[%c0_1, %c0_2] : memref<3x64xbf16, #tpu.memory_space<vmem>>, vector<3x64xbf16>
    %cst = arith.constant dense<0.000000e+00> : vector<128x64xf32>
    %2 = tpu.matmul %0, %1, %cst {dimension_numbers = #tpu.dot_dimension_numbers<[1], [0], [0], [1], [0, 0, 1, 1], [], []>} : vector<128x3xbf16>, vector<3x64xbf16>, vector<128x64xf32> -> vector<128x64xf32>
    %c0_3 = arith.constant 0 : index
    %c0_4 = arith.constant 0 : index
    %3 = vector.load %arg2[%c0_3, %c0_4] : memref<1x64xf32, #tpu.memory_space<vmem>>, vector<1x64xf32>
    %4 = vector.broadcast %3 : vector<1x64xf32> to vector<128x64xf32>
    %5 = arith.addf %2, %4 : vector<128x64xf32>
    %cst_5 = arith.constant 0.000000e+00 : f32
    %6 = vector.broadcast %cst_5 : f32 to vector<128x64xf32>
    %7 = arith.maximumf %5, %6 : vector<128x64xf32>
    %c0_6 = arith.constant 0 : index
    %c0_7 = arith.constant 0 : index
    %8 = vector.load %arg3[%c0_6, %c0_7] : memref<128x64xf32, #tpu.memory_space<vmem>>, vector<128x64xf32>
    tpu.vector_store %arg3[%c0_6, %c0_7], %7 {strides = array<i32>} : memref<128x64xf32, #tpu.memory_space<vmem>>, vector<128x64xf32>,
    return
  }
}

</mosaic_0001>

<llo_original>
// kernel: tpu_custom_call.1
$region0: #{tpu_custom_call.1}
  #allocation0 [shape = 'u32[]', space=smem, size = 0x4, offset = 0x4, fixed_abs, tag = 'smem constant byte address 0x4 - core index']
  #allocation1 [shape = 'u32[144,128]{1,0:T(1,128)}', space=vmem, size = 0x12000, scoped, tag = 'internal scratch']
  %s0 = inlined_call_operand.vmem [shape: bf16[128,3], index: 0, kind: input, shape index: {}]
  %s1 = inlined_call_operand.vmem [shape: bf16[3,64], index: 1, kind: input, shape index: {}]
  %s2 = inlined_call_operand.vmem [shape: f32[1,64], index: 2, kind: input, shape index: {}]
  %s3 = inlined_call_operand.vmem [shape: f32[128,64], index: 3, kind: output, shape index: {}]
  %s4 = sld [smem:[#allocation0]]
  $region22: #{tpu_custom_call.1} parent=0
    _
  %s6 = ssub.s32 1, %s4
  %s7 = scalar_select 0, %s6, %s4
  // Predicated region
  $region2: #{tpu_custom_call.1} parent=0 // pred_check
    _
  $region3: #{tpu_custom_call.1} parent=0 // pred_check_branch
    %9 = sbr.rel (0) target = $region5
  $region4: #{tpu_custom_call.1} parent=0 // pred_region
    _
  $region5: #{tpu_custom_call.1} parent=0 // pred_fallthru
    _
  // Predicated region
  $region6: #{tpu_custom_call.1} parent=0 // pred_check
    _
  $region7: #{tpu_custom_call.1} parent=0 // pred_check_branch
    %11 = sbr.rel (0) target = $region9
  $region8: #{tpu_custom_call.1} parent=0 // pred_region
    _
  $region9: #{tpu_custom_call.1} parent=0 // pred_fallthru
    _
  // Predicated region
  $region10: #{tpu_custom_call.1} parent=0 // pred_check
    _
  $region11: #{tpu_custom_call.1} parent=0 // pred_check_branch
    %13 = sbr.rel (0) target = $region13
  $region12: #{tpu_custom_call.1} parent=0 // pred_region
    _
  $region13: #{tpu_custom_call.1} parent=0 // pred_fallthru
    _
  %v15 = vld [vmem:[%s0] sm:$0xf]
  %v16 = vld [vmem:[%s0 + $0x4] sm:$0xf]
  %v17 = vld [vmem:[%s0 + $0x8] sm:$0xf]
  %v18 = vld [vmem:[%s0 + $0xc] sm:$0xf]
  %v19 = vld [vmem:[%s0 + $0x10] sm:$0xf]
  %v20 = vld [vmem:[%s0 + $0x14] sm:$0xf]
  %v21 = vld [vmem:[%s0 + $0x18] sm:$0xf]
  %v22 = vld [vmem:[%s0 + $0x1c] sm:$0xf]
  %v23 = vld [vmem:[%s0 + $0x20] sm:$0xf]
  %v24 = vld [vmem:[%s0 + $0x24] sm:$0xf]
  %v25 = vld [vmem:[%s0 + $0x28] sm:$0xf]
  %v26 = vld [vmem:[%s0 + $0x2c] sm:$0xf]
  %v27 = vld [vmem:[%s0 + $0x30] sm:$0xf]
  %v28 = vld [vmem:[%s0 + $0x34] sm:$0xf]
  %v29 = vld [vmem:[%s0 + $0x38] sm:$0xf]
  %v30 = vld [vmem:[%s0 + $0x3c] sm:$0xf]
  %v31 = vld [vmem:[%s1] sm:$0x3]
  %v32 = vld [vmem:[%s2] sm:$0x1]
  %v34 = vlaneseq
  %v35 = vshrl.u32 %v34, 7
  %v36 = vsub.s32 0, %v35
  %v37 = vrot.slane %v32, %v36
  %v55 = vunpack.c.l.b16 %v15
  %v56 = vunpack.c.l.b16 %v16
  %v57 = vunpack.c.l.b16 %v17
  %v58 = vunpack.c.l.b16 %v18
  %v59 = vunpack.c.l.b16 %v19
  %v60 = vunpack.c.l.b16 %v20
  %v61 = vunpack.c.l.b16 %v21
  %v62 = vunpack.c.l.b16 %v22
  %v63 = vunpack.c.l.b16 %v23
  %v64 = vunpack.c.l.b16 %v24
  %v65 = vunpack.c.l.b16 %v25
  %v66 = vunpack.c.l.b16 %v26
  %v67 = vunpack.c.l.b16 %v27
  %v68 = vunpack.c.l.b16 %v28
  %v69 = vunpack.c.l.b16 %v29
  %v70 = vunpack.c.l.b16 %v30
  %v71 = vpack.c.b16 %v56, %v55
  %v72 = vpack.c.b16 %v58, %v57
  %v73 = vpack.c.b16 %v60, %v59
  %v74 = vpack.c.b16 %v62, %v61
  %v75 = vpack.c.b16 %v64, %v63
  %v76 = vpack.c.b16 %v66, %v65
  %v77 = vpack.c.b16 %v68, %v67
  %v78 = vpack.c.b16 %v70, %v69
  %vm79 = vcmask 23552
  %v81 = vsel %vm79, %v71, 0
  %v84 = vsel %vm79, %v72, 0
  %v87 = vsel %vm79, %v73, 0
  %v90 = vsel %vm79, %v74, 0
  %v93 = vsel %vm79, %v75, 0
  %v96 = vsel %vm79, %v76, 0
  %v99 = vsel %vm79, %v77, 0
  %v102 = vsel %vm79, %v78, 0
  %vm104 = vcmask 1040384
  %vm105 = vcmask 1041408
  %v106 = vsel %vm104, 4294967295, 65535
  %v107 = vsel %vm105, %v106, 0
  %v109 = vand.u32 %v31, %v107
  %111 = vmatprep.subr.bf16.mxu0 0
  %112 = vmatpush1.bf16.msra.mxu0 %v109
  %113 = vmatprep.subr.bf16.mxu0 0
  %114 = vmatpush1.bf16.msra.mxu0 0
  %115 = vmatprep.subr.bf16.mxu0 0
  %116 = vmatpush1.bf16.msra.mxu0 0
  %117 = vmatprep.subr.bf16.mxu0 0
  %118 = vmatpush1.bf16.msra.mxu0 0
  %119 = vmatprep.subr.bf16.mxu0 0
  %120 = vmatpush1.bf16.msra.mxu0 0
  %121 = vmatprep.subr.bf16.mxu0 0
  %122 = vmatpush1.bf16.msra.mxu0 0
  %123 = vmatprep.subr.bf16.mxu0 0
  %124 = vmatpush1.bf16.msra.mxu0 0
  %125 = vmatprep.subr.bf16.mxu0 0
  %126 = vmatpush1.bf16.msra.mxu0 0
  %127 = vmatprep.subr.bf16.mxu0 0
  %128 = vmatpush1.bf16.msra.mxu0 0
  %129 = vmatprep.subr.bf16.mxu0 0
  %130 = vmatpush1.bf16.msra.mxu0 0
  %131 = vmatprep.subr.bf16.mxu0 0
  %132 = vmatpush1.bf16.msra.mxu0 0
  %133 = vmatprep.subr.bf16.mxu0 0
  %134 = vmatpush1.bf16.msra.mxu0 0
  %135 = vmatprep.subr.bf16.mxu0 0
  %136 = vmatpush1.bf16.msra.mxu0 0
  %137 = vmatprep.subr.bf16.mxu0 0
  %138 = vmatpush1.bf16.msra.mxu0 0
  %139 = vmatprep.subr.bf16.mxu0 0
  %140 = vmatpush1.bf16.msra.mxu0 0
  %141 = vmatprep.subr.bf16.mxu0 0
  %142 = vmatpush1.bf16.msra.mxu0 0
  %143 = vmatprep.mubr.bf16.mxu0 0
  %144 = vmatmul.mubr.bf16.gmra.mrb[0].mxu0 %v81
  %v145 = vpop.f32.mrb[0].mxu0
  %v146 = vadd.f32 %v37, %v145
  %v147 = vpop.f32.mrb[0].mxu0
  %v148 = vpop.f32.mrb[0].mxu0
  %v149 = vadd.f32 %v37, %v148
  %v150 = vpop.f32.mrb[0].mxu0
  %151 = vmatprep.mubr.bf16.mxu0 0
  %152 = vmatmul.mubr.bf16.gmra.mrb[0].mxu0 %v84
  %v153 = vpop.f32.mrb[0].mxu0
  %v154 = vadd.f32 %v37, %v153
  %v155 = vpop.f32.mrb[0].mxu0
  %v156 = vpop.f32.mrb[0].mxu0
  %v157 = vadd.f32 %v37, %v156
  %v158 = vpop.f32.mrb[0].mxu0
  %159 = vmatprep.mubr.bf16.mxu0 0
  %160 = vmatmul.mubr.bf16.gmra.mrb[0].mxu0 %v87
  %v161 = vpop.f32.mrb[0].mxu0
  %v162 = vadd.f32 %v37, %v161
  %v163 = vpop.f32.mrb[0].mxu0
  %v164 = vpop.f32.mrb[0].mxu0
  %v165 = vadd.f32 %v37, %v164
  %v166 = vpop.f32.mrb[0].mxu0
  %167 = vmatprep.mubr.bf16.mxu0 0
  %168 = vmatmul.mubr.bf16.gmra.mrb[0].mxu0 %v90
  %v169 = vpop.f32.mrb[0].mxu0
  %v170 = vadd.f32 %v37, %v169
  %v171 = vpop.f32.mrb[0].mxu0
  %v172 = vpop.f32.mrb[0].mxu0
  %v173 = vadd.f32 %v37, %v172
  %v174 = vpop.f32.mrb[0].mxu0
  %175 = vmatprep.mubr.bf16.mxu0 0
  %176 = vmatmul.mubr.bf16.gmra.mrb[0].mxu0 %v93
  %v177 = vpop.f32.mrb[0].mxu0
  %v178 = vadd.f32 %v37, %v177
  %v179 = vpop.f32.mrb[0].mxu0
  %v180 = vpop.f32.mrb[0].mxu0
  %v181 = vadd.f32 %v37, %v180
  %v182 = vpop.f32.mrb[0].mxu0
  %183 = vmatprep.mubr.bf16.mxu0 0
  %184 = vmatmul.mubr.bf16.gmra.mrb[0].mxu0 %v96
  %v185 = vpop.f32.mrb[0].mxu0
  %v186 = vadd.f32 %v37, %v185
  %v187 = vpop.f32.mrb[0].mxu0
  %v188 = vpop.f32.mrb[0].mxu0
  %v189 = vadd.f32 %v37, %v188
  %v190 = vpop.f32.mrb[0].mxu0
  %191 = vmatprep.mubr.bf16.mxu0 0
  %192 = vmatmul.mubr.bf16.gmra.mrb[0].mxu0 %v99
  %v193 = vpop.f32.mrb[0].mxu0
  %v194 = vadd.f32 %v37, %v193
  %v195 = vpop.f32.mrb[0].mxu0
  %v196 = vpop.f32.mrb[0].mxu0
  %v197 = vadd.f32 %v37, %v196
  %v198 = vpop.f32.mrb[0].mxu0
  %199 = vmatprep.mubr.bf16.mxu0 0
  %200 = vmatmul.mubr.bf16.gmra.mrb[0].mxu0 %v102
  %v201 = vpop.f32.mrb[0].mxu0
  %v202 = vadd.f32 %v37, %v201
  %v203 = vpop.f32.mrb[0].mxu0
  %v204 = vpop.f32.mrb[0].mxu0
  %v205 = vadd.f32 %v37, %v204
  %v206 = vpop.f32.mrb[0].mxu0
  %207 = vdwg.mxu0
  %v208 = vmax.f32 %v146, 0.0
  %v209 = vmax.f32 %v149, 0.0
  %v210 = vmax.f32 %v154, 0.0
  %v211 = vmax.f32 %v157, 0.0
  %v212 = vmax.f32 %v162, 0.0
  %v213 = vmax.f32 %v165, 0.0
  %v214 = vmax.f32 %v170, 0.0
  %v215 = vmax.f32 %v173, 0.0
  %v216 = vmax.f32 %v178, 0.0
  %v217 = vmax.f32 %v181, 0.0
  %v218 = vmax.f32 %v186, 0.0
  %v219 = vmax.f32 %v189, 0.0
  %v220 = vmax.f32 %v194, 0.0
  %v221 = vmax.f32 %v197, 0.0
  %v222 = vmax.f32 %v202, 0.0
  %v223 = vmax.f32 %v205, 0.0
  %vm224 = vcmask 523264
  %225 = vst.msk [vmem:[%s3] sm:$0xff] %vm224, %v208
  %226 = vst.msk [vmem:[%s3 + $0x8] sm:$0xff] %vm224, %v209
  %227 = vst.msk [vmem:[%s3 + $0x10] sm:$0xff] %vm224, %v210
  %228 = vst.msk [vmem:[%s3 + $0x18] sm:$0xff] %vm224, %v211
  %229 = vst.msk [vmem:[%s3 + $0x20] sm:$0xff] %vm224, %v212
  %230 = vst.msk [vmem:[%s3 + $0x28] sm:$0xff] %vm224, %v213
  %231 = vst.msk [vmem:[%s3 + $0x30] sm:$0xff] %vm224, %v214
  %232 = vst.msk [vmem:[%s3 + $0x38] sm:$0xff] %vm224, %v215
  %233 = vst.msk [vmem:[%s3 + $0x40] sm:$0xff] %vm224, %v216
  %234 = vst.msk [vmem:[%s3 + $0x48] sm:$0xff] %vm224, %v217
  %235 = vst.msk [vmem:[%s3 + $0x50] sm:$0xff] %vm224, %v218
  %236 = vst.msk [vmem:[%s3 + $0x58] sm:$0xff] %vm224, %v219
  %237 = vst.msk [vmem:[%s3 + $0x60] sm:$0xff] %vm224, %v220
  %238 = vst.msk [vmem:[%s3 + $0x68] sm:$0xff] %vm224, %v221
  %239 = vst.msk [vmem:[%s3 + $0x70] sm:$0xff] %vm224, %v222
  %240 = vst.msk [vmem:[%s3 + $0x78] sm:$0xff] %vm224, %v223
  // Predicated region
  $region14: #{tpu_custom_call.1} parent=0 // pred_check
    _
  $region15: #{tpu_custom_call.1} parent=0 // pred_check_branch
    %242 = sbr.rel (0) target = $region17
  $region16: #{tpu_custom_call.1} parent=0 // pred_region
    _
  $region17: #{tpu_custom_call.1} parent=0 // pred_fallthru
    _
  // Predicated region
  $region18: #{tpu_custom_call.1} parent=0 // pred_check
    _
  $region19: #{tpu_custom_call.1} parent=0 // pred_check_branch
    %244 = sbr.rel (0) target = $region21
  $region20: #{tpu_custom_call.1} parent=0 // pred_region
    _
  $region21: #{tpu_custom_call.1} parent=0 // pred_fallthru
    _

</llo_original>
